<compile_context>
chip_gen: v5e
topology: v5e:2x2
jax: 0.10.0
libtpu: 0.0.40
codegen_flags: <defaults>
</compile_context>

<pallas_src>
import jax
import jax.numpy as jnp
from jax.experimental import pallas as pl
from jax.experimental.pallas import tpu as pltpu


def _film_kernel(gb_ref, x_ref, o_ref):
    """One (rt, ct) FiLM tile: out = gamma * x + beta.

    gb_ref: (2, rt, 1)   [0] = gamma rows, [1] = beta rows (already x.dtype)
    x_ref / o_ref: (rt, ct)
    """
    g = gb_ref[0]                      # (rt, 1) -> lane-broadcast over ct
    b = gb_ref[1]                      # (rt, 1)
    o_ref[...] = (g * x_ref[...] + b).astype(o_ref.dtype)


def _pick_tiles(R, HW, itemsize):
    """Dtype-aware tile selection: ~4 MiB lane-dense blocks, no host padding."""
    pack = {4: 8, 2: 16, 1: 32}.get(itemsize, 8)   # sublane packing per dtype
    target_bytes = 4 << 20                          # ~4 MiB per x block
    max_ct = (8192 * 4) // itemsize                 # 8192 f32 / 16384 bf16 lanes

    # Column (lane) tile: whole spatial extent when it fits (legal since it
    # equals the full dim), otherwise a multiple of 128 with a masked edge.
    ct = HW if HW <= max_ct else max_ct

    # Row (sublane) tile: fill the byte budget; multiple of the dtype pack,
    # or the full row extent (legal even when not a pack multiple).
    rows_budget = max(pack, (target_bytes // max(ct * itemsize, 1)) // pack * pack)
    rt = R if R <= rows_budget else rows_budget

    # v7x megacore: keep >= 8 grid steps on non-tiny tensors so both
    # TensorCores get work.  Tiny tensors keep a single step (step overhead
    # would dominate; no-op cost on 1-TC v5e/v6e).
    if R * HW * itemsize >= (2 << 20):
        while rt >= 2 * pack and pl.cdiv(R, rt) * pl.cdiv(HW, ct) < 8:
            rt = max(pack, (rt // 2) // pack * pack)
    return rt, ct


def film_modulation(x, text_embed, wg, bg, wb, bb):
    """FiLM forward.

    x:          (B, C, H, W)
    text_embed: (B, T)
    wg, wb:     (C, T)   PyTorch nn.Linear weight layout (out_features, in_features)
    bg, bb:     (C,)
    returns:    (B, C, H, W)
    """
    B, C, H, W = x.shape
    R, HW = B * C, H * W

    # ---- gamma/beta projection: one (B,T)@(T,2C) matmul in f32 (plain JAX,
    #      off the per-tile critical path).
    w_cat = jnp.concatenate([wg, wb], axis=0).astype(jnp.float32)      # (2C, T)
    b_cat = jnp.concatenate([bg, bb], axis=0).astype(jnp.float32)      # (2C,)
    gb = text_embed.astype(jnp.float32) @ w_cat.T + b_cat              # (B, 2C)
    gamma = gb[:, :C].reshape(R)                                       # row order b*C + c
    beta = gb[:, C:].reshape(R)
    # Merge into one side input (2, R, 1); cast once so the kernel body is a
    # pure load-FMA-store stream.
    gb3 = jnp.stack([gamma, beta], axis=0).reshape(2, R, 1).astype(x.dtype)

    # ---- Lane-dense 2-D view: rows = B*C (sublanes), cols = H*W (lanes).
    x2 = x.reshape(R, HW)

    rt, ct = _pick_tiles(R, HW, jnp.dtype(x.dtype).itemsize)
    # No padding / output slicing: ragged boundary blocks (if any) are masked
    # by Pallas; out-of-range reads are dropped at writeback.
    grid = (pl.cdiv(R, rt), pl.cdiv(HW, ct))

    out2 = pl.pallas_call(
        _film_kernel,
        out_shape=jax.ShapeDtypeStruct((R, HW), x.dtype),
        grid_spec=pltpu.PrefetchScalarGridSpec(
            num_scalar_prefetch=0,
            grid=grid,
            in_specs=[
                # gamma/beta block index is invariant along the inner (column)
                # axis -> its DMA is issued once per row block and dedup'd.
                pl.BlockSpec((2, rt, 1), lambda r, c: (0, r, 0)),
                pl.BlockSpec((rt, ct), lambda r, c: (r, c)),
            ],
            out_specs=pl.BlockSpec((rt, ct), lambda r, c: (r, c)),
        ),
        compiler_params=pltpu.CompilerParams(
            dimension_semantics=("parallel", "parallel"),
            # ~4 MiB blocks double-buffered (2x in + 2x out ~= 16 MiB) exceed
            # v5e's 16 MiB default scoped-VMEM; raise explicitly.  32 MiB is
            # safe on all generations (well under v7x's 64 MiB physical / TC).
            vmem_limit_bytes=32 * 1024 * 1024,
        ),
    )(gb3, x2)

    return out2.reshape(B, C, H, W)


if __name__ == "__main__":
    # Small, deterministic example shapes consistent with the module.
    B, C, H, W = 2, 4, 16, 16
    T = 32  # text_dim

    key = jax.random.PRNGKey(0)
    kx, kt, kwg, kbg, kwb, kbb = jax.random.split(key, 6)

    x = jax.random.normal(kx, (B, C, H, W), dtype=jnp.float32)
    text_embed = jax.random.normal(kt, (B, T), dtype=jnp.float32)

    # Deterministic "Linear" parameters (PyTorch weight layout: (out, in)).
    scale = 1.0 / jnp.sqrt(T)
    wg = jax.random.uniform(kwg, (C, T), jnp.float32, -scale, scale)
    bg = jax.random.uniform(kbg, (C,), jnp.float32, -scale, scale)
    wb = jax.random.uniform(kwb, (C, T), jnp.float32, -scale, scale)
    bb = jax.random.uniform(kbb, (C,), jnp.float32, -scale, scale)

    out = film_modulation(x, text_embed, wg, bg, wb, bb)
    out = jax.block_until_ready(out)

    # Pure-JAX reference for correctness.
    gamma_ref = text_embed @ wg.T + bg          # (B, C)
    beta_ref = text_embed @ wb.T + bb           # (B, C)
    ref = gamma_ref[:, :, None, None] * x + beta_ref[:, :, None, None]

    assert out.shape == (B, C, H, W)
    assert jnp.allclose(out, ref, atol=1e-5, rtol=1e-5), "mismatch vs reference"

    print("KERNEL_OK")
</pallas_src>

<mosaic_0001>
module attributes {stable_mosaic.version = 11 : i64} {
  func.func @_film_kernel(%arg0: i32, %arg1: i32, %arg2: memref<2x8x1xf32, #tpu.memory_space<vmem>>, %arg3: memref<8x256xf32, #tpu.memory_space<vmem>>, %arg4: memref<8x256xf32, #tpu.memory_space<vmem>>) attributes {dimension_semantics = [#tpu.dimension_semantics<parallel>, #tpu.dimension_semantics<parallel>], iteration_bounds = array<i64: 1, 1>, scalar_prefetch = 0 : i64, scratch_operands = 0 : i64, tpu.core_type = #tpu.core_type<tc>, window_params = [{transform_indices = @transform_0, window_bounds = array<i64: 2, 8, 1>}, {transform_indices = @transform_1, window_bounds = array<i64: 8, 256>}, {transform_indices = @transform_2, window_bounds = array<i64: 8, 256>}]} {
    %c0 = arith.constant 0 : index
    %c0_0 = arith.constant 0 : index
    %c0_1 = arith.constant 0 : index
    %0 = vector.load %arg2[%c0, %c0_0, %c0_1] : memref<2x8x1xf32, #tpu.memory_space<vmem>>, vector<1x8x1xf32>
    %1 = vector.shape_cast %0 : vector<1x8x1xf32> to vector<8x1xf32>
    %c1 = arith.constant 1 : index
    %c0_2 = arith.constant 0 : index
    %c0_3 = arith.constant 0 : index
    %2 = vector.load %arg2[%c1, %c0_2, %c0_3] : memref<2x8x1xf32, #tpu.memory_space<vmem>>, vector<1x8x1xf32>
    %3 = vector.shape_cast %2 : vector<1x8x1xf32> to vector<8x1xf32>
    %c0_4 = arith.constant 0 : index
    %c0_5 = arith.constant 0 : index
    %4 = vector.load %arg3[%c0_4, %c0_5] : memref<8x256xf32, #tpu.memory_space<vmem>>, vector<8x256xf32>
    %5 = vector.broadcast %1 : vector<8x1xf32> to vector<8x256xf32>
    %6 = arith.mulf %5, %4 : vector<8x256xf32>
    %7 = vector.broadcast %3 : vector<8x1xf32> to vector<8x256xf32>
    %8 = arith.addf %6, %7 : vector<8x256xf32>
    %c0_6 = arith.constant 0 : index
    %c0_7 = arith.constant 0 : index
    %9 = vector.load %arg4[%c0_6, %c0_7] : memref<8x256xf32, #tpu.memory_space<vmem>>, vector<8x256xf32>
    tpu.vector_store %arg4[%c0_6, %c0_7], %8 {strides = array<i32>} : memref<8x256xf32, #tpu.memory_space<vmem>>, vector<8x256xf32>,
    return
  }
  func.func @transform_0(%arg0: i32, %arg1: i32) -> (i32, i32, i32) {
    %c0_i32 = arith.constant 0 : i32
    %c0_i32_0 = arith.constant 0 : i32
    %c0_i32_1 = arith.constant 0 : i32
    return %c0_i32, %arg0, %c0_i32_0 : i32, i32, i32
  }
  func.func @transform_1(%arg0: i32, %arg1: i32) -> (i32, i32) {
    %c0_i32 = arith.constant 0 : i32
    return %arg0, %arg1 : i32, i32
  }
  func.func @transform_2(%arg0: i32, %arg1: i32) -> (i32, i32) {
    %c0_i32 = arith.constant 0 : i32
    return %arg0, %arg1 : i32, i32
  }
}

</mosaic_0001>

<llo_original>
// kernel: tpu_custom_call.1
$region0: #{tpu_custom_call.1}
  #allocation0 [shape = 'u32[]', space=smem, size = 0x4, offset = 0x4, fixed_abs, tag = 'smem constant byte address 0x4 - core index']
  #allocation1 [shape = 'u32[72,128]{1,0:T(1,128)}', space=vmem, size = 0x9000, scoped, tag = 'internal scratch']
  %s0 = inlined_call_operand.vmem [shape: f32[2,8,1], index: 0, kind: input, shape index: {}]
  %s1 = inlined_call_operand.vmem [shape: f32[8,256], index: 1, kind: input, shape index: {}]
  %s2 = inlined_call_operand.hbm [shape: f32[8,256], index: 2, kind: output, shape index: {}]
  %s3 = sld [smem:[#allocation0]]
  $region18: #{tpu_custom_call.1} parent=0
    _
  %s5 = ssub.s32 1, %s3
  %s6 = scalar_select 0, %s5, %s3
  $region1: #{tpu_custom_call.1} parent=0
    #allocation2 [shape = 'u8[8192]{0}', space=vmem, size = 0x2000, scoped, tag = 'output window, operand 0, single buffered']
    #allocation3 [shape = 's32[1]{0}', space=sflag, size = 0x4, scoped, tag = 'scoped memory for tpu_custom_call.1']
    %7 = vsyncpa [#allocation3], 0
    // Predicated region
    $region2: #{tpu_custom_call.1} parent=1 // pred_check
      _
    $region3: #{tpu_custom_call.1} parent=1 // pred_check_branch
      %9 = sbr.rel (0) target = $region5
    $region4: #{tpu_custom_call.1} parent=1 // pred_region
      _
    $region5: #{tpu_custom_call.1} parent=1 // pred_fallthru
      _
    // Predicated region
    $region6: #{tpu_custom_call.1} parent=1 // pred_check
      _
    $region7: #{tpu_custom_call.1} parent=1 // pred_check_branch
      %11 = sbr.rel (0) target = $region9
    $region8: #{tpu_custom_call.1} parent=1 // pred_region
      _
    $region9: #{tpu_custom_call.1} parent=1 // pred_fallthru
      _
    %v12 = vld [vmem:[%s0] sm:$0xff]
    %s13 = scalar_lea.vmem %s0, 8
    %v14 = vld [vmem:[%s13] sm:$0xff]
    %v15 = vld [vmem:[%s1] sm:$0xff]
    %v16 = vld [vmem:[%s1 + $0x8] sm:$0xff]
    %18 = vset.pattern.permute.xlu0 0
    %19 = vperm.xlu0 %18, %v12
    %v20 = vpop.permute.xlu0 %19
    %v22 = vmul.f32 %v20, %v15
    %v23 = vmul.f32 %v20, %v16
    %25 = vset.pattern.permute.xlu0 0
    %26 = vperm.xlu0 %25, %v14
    %v27 = vpop.permute.xlu0 %26
    %v29 = vadd.f32 %v22, %v27
    %v30 = vadd.f32 %v23, %v27
    %31 = vst [vmem:[#allocation2] sm:$0xff] %v29
    %32 = vst [vmem:[#allocation2 + $0x8] sm:$0xff] %v30
    // Predicated region
    $region10: #{tpu_custom_call.1} parent=1 // pred_check
      _
    $region11: #{tpu_custom_call.1} parent=1 // pred_check_branch
      %34 = sbr.rel (0) target = $region13
    $region12: #{tpu_custom_call.1} parent=1 // pred_region
      %36 = vsyncadd [#allocation3], 0
      %s38 = sshll.u32 [#allocation2], 4
      %s39 = int_to_ptr.vmem [resolvable:$true] %s38
      %s40 = sshll.u32 %s2, 4
      %s41 = int_to_ptr.hbm [resolvable:$true] %s40
      %43 = dma.vmem_to_hbm [thread:$0]  %s39, 256, %s41, [#allocation3]
    $region13: #{tpu_custom_call.1} parent=1 // pred_fallthru
      _
    // Predicated region
    $region14: #{tpu_custom_call.1} parent=1 // pred_check
      _
    $region15: #{tpu_custom_call.1} parent=1 // pred_check_branch
      %45 = sbr.rel (0) target = $region17
    $region16: #{tpu_custom_call.1} parent=1 // pred_region
      %47 = dma.done [#allocation3], 256
    $region17: #{tpu_custom_call.1} parent=1 // pred_fallthru
      _
    %48 = vsyncpa [#allocation3], 1

</llo_original>
